<compile_context>
chip_gen: v5e
topology: v5e:2x2
jax: 0.10.0
libtpu: 0.0.40
codegen_flags: <defaults>
</compile_context>

<pallas_src>
import numpy as np
import jax
import jax.numpy as jnp
from jax.experimental import pallas as pl
from jax.experimental.pallas import tpu as pltpu


_LANE = 128
_SUBLANE = 8
_TILE_CAP = 1024   # 512–1024-row tiles reach ~85% of HBM roofline; <2 MiB VMEM


# ----------------------------- Pallas kernels ------------------------------

def _silu_f32(x):
    # e_Swish_(beta=1) == SiLU; keep elementwise math in f32 (v5e has no bf16 VPU/EUP)
    return x * jax.nn.sigmoid(x)


def _fused_seq_kernel(x_ref,
                      nw1_ref, nb1_ref, nw2_ref, nb2_ref,
                      cwt_ref, cb_ref,
                      o_ref):
    """Fused forward, coords=None path.

    SiLU(SiLU(SiLU(x@W1+b1)@W2+b2) @ Wc_top + bc); Dropout(p=0) is identity.
    The struct half of the scaffold is zero, so only Wc[:seq_reason] is used.
    Wc_top / bc are zero-padded to 128 output lanes for unmasked stores; the
    slab is written in o_ref.dtype (bf16) to halve writeback bytes.
    """
    h = jnp.dot(x_ref[...].astype(nw1_ref.dtype), nw1_ref[...],
                preferred_element_type=jnp.float32)
    h = _silu_f32(h + nb1_ref[...].astype(jnp.float32))
    n = jnp.dot(h.astype(nw2_ref.dtype), nw2_ref[...],
                preferred_element_type=jnp.float32)
    n = _silu_f32(n + nb2_ref[...].astype(jnp.float32))
    y = jnp.dot(n.astype(cwt_ref.dtype), cwt_ref[...],
                preferred_element_type=jnp.float32)
    y = _silu_f32(y + cb_ref[...].astype(jnp.float32))
    o_ref[...] = y.astype(o_ref.dtype)


def _fused_seq_struct_kernel(xs_ref, xt_ref,
                             nw1_ref, nb1_ref, nw2_ref, nb2_ref,
                             sw1_ref, sb1_ref, sw2_ref, sb2_ref,
                             cwt_ref, cwb_ref, cb_ref,
                             o_ref):
    """Fused forward with a struct embedding.

    scaffold concat is replaced by the split-weight identity:
        scaffold @ Wc == nlp_out @ Wc_top + struct_out @ Wc_bot
    """
    # seq branch (nlp_mlp)
    h = jnp.dot(xs_ref[...].astype(nw1_ref.dtype), nw1_ref[...],
                preferred_element_type=jnp.float32)
    h = _silu_f32(h + nb1_ref[...].astype(jnp.float32))
    n = jnp.dot(h.astype(nw2_ref.dtype), nw2_ref[...],
                preferred_element_type=jnp.float32)
    n = _silu_f32(n + nb2_ref[...].astype(jnp.float32))
    # struct branch (struct_mlp)
    g = jnp.dot(xt_ref[...].astype(sw1_ref.dtype), sw1_ref[...],
                preferred_element_type=jnp.float32)
    g = _silu_f32(g + sb1_ref[...].astype(jnp.float32))
    s = jnp.dot(g.astype(sw2_ref.dtype), sw2_ref[...],
                preferred_element_type=jnp.float32)
    s = _silu_f32(s + sb2_ref[...].astype(jnp.float32))
    # common_mlp on [nlp | struct] via split weight (no concat)
    y = (jnp.dot(n.astype(cwt_ref.dtype), cwt_ref[...],
                 preferred_element_type=jnp.float32)
         + jnp.dot(s.astype(cwb_ref.dtype), cwb_ref[...],
                   preferred_element_type=jnp.float32))
    y = _silu_f32(y + cb_ref[...].astype(jnp.float32))
    o_ref[...] = y.astype(o_ref.dtype)


# ------------------------------- wrappers -----------------------------------

def _cdiv(a, b):
    return -(-a // b)


def _round_up(x, m):
    return _cdiv(x, m) * m


def _pad_rows(x, rows):
    return x if x.shape[0] == rows else jnp.pad(x, ((0, rows - x.shape[0]), (0, 0)))


def _pad_cols(x, cols):
    return x if x.shape[1] == cols else jnp.pad(x, ((0, 0), (0, cols - x.shape[1])))


def _row_spec(shape):
    # batch-tiled operand: block index advances with the grid
    return pl.BlockSpec(shape, lambda i: (i, 0))


def _rep_spec(shape):
    # weights / biases: same block every step -> stay VMEM-resident
    return pl.BlockSpec(shape, lambda i: (0, 0))


def _choose_tiling(batch):
    """Balanced batch tiles: cap at _TILE_CAP rows, keep padding waste <= 7 rows
    per tile, and keep >= 2 grid steps once there is enough work so the
    'parallel' axis can shard across v7x's two TensorCores."""
    bp_min = _round_up(batch, _SUBLANE)
    n_tiles = _cdiv(bp_min, _TILE_CAP)
    if bp_min >= 2 * _SUBLANE:
        n_tiles = max(n_tiles, 2)
    tb = _round_up(_cdiv(batch, n_tiles), _SUBLANE)
    return tb, tb * n_tiles


def _weight_bytes(*arrs):
    return sum(int(a.size) * int(a.dtype.itemsize) for a in arrs)


def fused_forward_seq(seq, nw1, nb1, nw2, nb2, cw_top, cb, tb, slab_dtype):
    """Padded batch (Bp, Dseq) -> padded slab (Bp, Dpad) in slab_dtype."""
    Bp, Dseq = seq.shape
    H = nw1.shape[1]
    Sr = nw2.shape[1]
    Dpad = cw_top.shape[1]
    out_itemsize = int(np.dtype(slab_dtype).itemsize)
    cost = pl.CostEstimate(
        flops=2 * Bp * (Dseq * H + H * Sr + Sr * Dpad),
        transcendentals=Bp * (H + Sr + Dpad),
        bytes_accessed=(Bp * Dseq * int(seq.dtype.itemsize)
                        + Bp * Dpad * out_itemsize
                        + _weight_bytes(nw1, nb1, nw2, nb2, cw_top, cb)))
    return pl.pallas_call(
        _fused_seq_kernel,
        out_shape=jax.ShapeDtypeStruct((Bp, Dpad), slab_dtype),
        grid=(Bp // tb,),
        in_specs=[
            _row_spec((tb, Dseq)),
            _rep_spec((Dseq, H)), _rep_spec((1, H)),
            _rep_spec((H, Sr)), _rep_spec((1, Sr)),
            _rep_spec((Sr, Dpad)), _rep_spec((1, Dpad)),
        ],
        out_specs=_row_spec((tb, Dpad)),
        compiler_params=pltpu.CompilerParams(
            dimension_semantics=("parallel",)),
        cost_estimate=cost,
    )(seq, nw1, nb1, nw2, nb2, cw_top, cb)


def fused_forward_seq_struct(seq, struct,
                             nw1, nb1, nw2, nb2,
                             sw1, sb1, sw2, sb2,
                             cw_top, cw_bot, cb, tb, slab_dtype):
    Bp, Dseq = seq.shape
    Dstr = struct.shape[1]
    Hn = nw1.shape[1]
    Sr = nw2.shape[1]
    Hs = sw1.shape[1]
    Tr = sw2.shape[1]
    Dpad = cw_top.shape[1]
    out_itemsize = int(np.dtype(slab_dtype).itemsize)
    cost = pl.CostEstimate(
        flops=2 * Bp * (Dseq * Hn + Hn * Sr + Dstr * Hs + Hs * Tr
                        + Sr * Dpad + Tr * Dpad),
        transcendentals=Bp * (Hn + Sr + Hs + Tr + Dpad),
        bytes_accessed=(Bp * (Dseq * int(seq.dtype.itemsize)
                              + Dstr * int(struct.dtype.itemsize))
                        + Bp * Dpad * out_itemsize
                        + _weight_bytes(nw1, nb1, nw2, nb2, sw1, sb1, sw2, sb2,
                                        cw_top, cw_bot, cb)))
    return pl.pallas_call(
        _fused_seq_struct_kernel,
        out_shape=jax.ShapeDtypeStruct((Bp, Dpad), slab_dtype),
        grid=(Bp // tb,),
        in_specs=[
            _row_spec((tb, Dseq)),
            _row_spec((tb, Dstr)),
            _rep_spec((Dseq, Hn)), _rep_spec((1, Hn)),
            _rep_spec((Hn, Sr)), _rep_spec((1, Sr)),
            _rep_spec((Dstr, Hs)), _rep_spec((1, Hs)),
            _rep_spec((Hs, Tr)), _rep_spec((1, Tr)),
            _rep_spec((Sr, Dpad)), _rep_spec((Tr, Dpad)), _rep_spec((1, Dpad)),
        ],
        out_specs=_row_spec((tb, Dpad)),
        compiler_params=pltpu.CompilerParams(
            dimension_semantics=("parallel",)),
        cost_estimate=cost,
    )(seq, struct, nw1, nb1, nw2, nb2, sw1, sb1, sw2, sb2, cw_top, cw_bot, cb)


# ------------------------------ model setup ---------------------------------

def _init_linear(key, fan_in, fan_out, dtype=jnp.float32):
    """PyTorch-style uniform(-1/sqrt(fan_in), 1/sqrt(fan_in)) init."""
    kw, kb = jax.random.split(key)
    bound = 1.0 / float(np.sqrt(fan_in))
    w = jax.random.uniform(kw, (fan_in, fan_out), dtype, -bound, bound)
    b = jax.random.uniform(kb, (1, fan_out), dtype, -bound, bound)
    return w, b


class MutPredictPallas:
    def __init__(self, seq_embedd_dim=32, struct_embedd_dim=16,
                 seq_reason_dim=32, struct_reason_dim=16,
                 dropout=0.0, param_dtype=jnp.float32,
                 slab_dtype=jnp.bfloat16, key=jax.random.PRNGKey(0)):
        assert dropout == 0.0  # Dropout(p=0) == identity; matches module default
        self.seq_reason_dim = seq_reason_dim
        self.struct_reason_dim = struct_reason_dim
        self.out_dim = seq_reason_dim + struct_reason_dim
        self.out_pad = _round_up(self.out_dim, _LANE)   # lane-dense output slab
        self.slab_dtype = slab_dtype                    # bf16 slab halves HBM writeback

        ks = jax.random.split(key, 5)
        # nlp_mlp: Linear(seq_embedd, 2*seq_reason) -> SiLU -> Linear(2*seq_reason, seq_reason) -> SiLU
        self.nlp_w1, self.nlp_b1 = _init_linear(ks[0], seq_embedd_dim, 2 * seq_reason_dim, param_dtype)
        self.nlp_w2, self.nlp_b2 = _init_linear(ks[1], 2 * seq_reason_dim, seq_reason_dim, param_dtype)
        # struct_mlp: Linear(struct_reason, 2*struct_reason) -> SiLU -> Linear(2*struct_reason, struct_reason) -> SiLU
        # (fan-in is struct_reason_dim exactly as in the reference; struct_embedd_dim is unused there too)
        self.str_w1, self.str_b1 = _init_linear(ks[2], struct_reason_dim, 2 * struct_reason_dim, param_dtype)
        self.str_w2, self.str_b2 = _init_linear(ks[3], 2 * struct_reason_dim, struct_reason_dim, param_dtype)
        # common_mlp: Linear(D, D) -> SiLU  — split into top/bot rows (replaces concat)
        # and zero-padded to 128 output lanes (unmasked 128-wide stores).
        com_w, com_b = _init_linear(ks[4], self.out_dim, self.out_dim, param_dtype)
        self.com_w_top = _pad_cols(com_w[:seq_reason_dim, :], self.out_pad)
        self.com_w_bot = _pad_cols(com_w[seq_reason_dim:, :], self.out_pad)
        self.com_b = _pad_cols(com_b, self.out_pad)

    def __call__(self, seq_embedds, struct_embedds=None):
        """seq_embedds: (b, seq_embedd_dim); struct_embedds: optional (b, struct_reason_dim)."""
        B = seq_embedds.shape[0]
        tb, Bp = _choose_tiling(B)
        seq_p = _pad_rows(seq_embedds, Bp)

        # TODO(synk): seq_embedder / msa_embedder are external ESM/MSA models; embedding is an input.
        if struct_embedds is None:
            # TODO(synk): Net_3d (GVP structure encoder) is an empty placeholder in the reference;
            #             the struct half of the scaffold is zero so com_w_bot is skipped entirely.
            out_p = fused_forward_seq(
                seq_p, self.nlp_w1, self.nlp_b1, self.nlp_w2, self.nlp_b2,
                self.com_w_top, self.com_b, tb, self.slab_dtype)
        else:
            str_p = _pad_rows(struct_embedds, Bp)
            out_p = fused_forward_seq_struct(
                seq_p, str_p,
                self.nlp_w1, self.nlp_b1, self.nlp_w2, self.nlp_b2,
                self.str_w1, self.str_b1, self.str_w2, self.str_b2,
                self.com_w_top, self.com_w_bot, self.com_b, tb, self.slab_dtype)

        # TODO(synk): Hier_CLF requires Hier_Helper (undefined) and hier_graph={} has no nodes;
        #             return the common-MLP embedding instead.
        return out_p[:B, :self.out_dim].astype(seq_embedds.dtype)


# --------------------------- pure-JAX reference ------------------------------

def _reference_forward(model, seq, struct=None):
    def silu(x):
        return x * jax.nn.sigmoid(x)
    f32 = jnp.float32
    n = silu(seq.astype(f32) @ model.nlp_w1.astype(f32) + model.nlp_b1.astype(f32))
    n = silu(n @ model.nlp_w2.astype(f32) + model.nlp_b2.astype(f32))
    scaffold = jnp.zeros((seq.shape[0], model.out_dim), f32)
    scaffold = scaffold.at[:, :model.seq_reason_dim].set(n)
    if struct is not None:
        s = silu(struct.astype(f32) @ model.str_w1.astype(f32) + model.str_b1.astype(f32))
        s = silu(s @ model.str_w2.astype(f32) + model.str_b2.astype(f32))
        scaffold = scaffold.at[:, model.seq_reason_dim:].set(s)
    com_w = jnp.concatenate(
        [model.com_w_top[:, :model.out_dim], model.com_w_bot[:, :model.out_dim]],
        axis=0).astype(f32)
    return silu(scaffold @ com_w + model.com_b[:, :model.out_dim].astype(f32))


# --------------------------------- main --------------------------------------

if __name__ == "__main__":
    key = jax.random.PRNGKey(0)
    k_model, k_seq, k_str = jax.random.split(key, 3)

    batch = 2
    seq_embedd_dim = 32
    struct_embedd_dim = 16
    seq_reason_dim = 32
    struct_reason_dim = 16

    model = MutPredictPallas(seq_embedd_dim=seq_embedd_dim,
                             struct_embedd_dim=struct_embedd_dim,
                             seq_reason_dim=seq_reason_dim,
                             struct_reason_dim=struct_reason_dim,
                             key=k_model)

    # seq_embedds stand in for embedd_seq_batch(seqs): (b, seq_embedd_dim)
    seq_embedds = jax.random.normal(k_seq, (batch, seq_embedd_dim), jnp.float32)

    # default path (coords=None): struct half of scaffold stays zero
    out = jax.block_until_ready(model(seq_embedds))
    assert out.shape == (batch, seq_reason_dim + struct_reason_dim)
    assert bool(jnp.all(jnp.isfinite(out)))
    ref = _reference_forward(model, seq_embedds)
    assert bool(jnp.allclose(out, ref, rtol=3e-2, atol=3e-2))  # bf16 output slab

    # optional struct path (exercises the second fused kernel)
    struct_embedds = jax.random.normal(k_str, (batch, struct_reason_dim), jnp.float32)
    out2 = jax.block_until_ready(model(seq_embedds, struct_embedds))
    assert out2.shape == (batch, seq_reason_dim + struct_reason_dim)
    assert bool(jnp.all(jnp.isfinite(out2)))
    ref2 = _reference_forward(model, seq_embedds, struct_embedds)
    assert bool(jnp.allclose(out2, ref2, rtol=3e-2, atol=3e-2))

    # slightly larger batch to exercise the multi-tile "parallel" grid + padding path
    seq_big = jax.random.normal(k_seq, (20, seq_embedd_dim), jnp.float32)
    out3 = jax.block_until_ready(model(seq_big))
    assert out3.shape == (20, seq_reason_dim + struct_reason_dim)
    ref3 = _reference_forward(model, seq_big)
    assert bool(jnp.allclose(out3, ref3, rtol=3e-2, atol=3e-2))

    print("KERNEL_OK")
</pallas_src>

<mosaic_0001>
module attributes {stable_mosaic.version = 11 : i64} {
  func.func @_fused_seq_kernel(%arg0: i32, %arg1: memref<8x32xf32, #tpu.memory_space<vmem>>, %arg2: memref<32x64xf32, #tpu.memory_space<vmem>>, %arg3: memref<1x64xf32, #tpu.memory_space<vmem>>, %arg4: memref<64x32xf32, #tpu.memory_space<vmem>>, %arg5: memref<1x32xf32, #tpu.memory_space<vmem>>, %arg6: memref<32x128xf32, #tpu.memory_space<vmem>>, %arg7: memref<1x128xf32, #tpu.memory_space<vmem>>, %arg8: memref<8x128xbf16, #tpu.memory_space<vmem>>) attributes {dimension_semantics = [#tpu.dimension_semantics<parallel>], iteration_bounds = array<i64: 1>, scalar_prefetch = 0 : i64, scratch_operands = 0 : i64, tpu.core_type = #tpu.core_type<tc>, window_params = [{transform_indices = @transform_0, window_bounds = array<i64: 8, 32>}, {pipeline_mode = #tpu.pipeline_mode<synchronous>, transform_indices = @transform_1, window_bounds = array<i64: 32, 64>}, {pipeline_mode = #tpu.pipeline_mode<synchronous>, transform_indices = @transform_2, window_bounds = array<i64: 1, 64>}, {pipeline_mode = #tpu.pipeline_mode<synchronous>, transform_indices = @transform_3, window_bounds = array<i64: 64, 32>}, {pipeline_mode = #tpu.pipeline_mode<synchronous>, transform_indices = @transform_4, window_bounds = array<i64: 1, 32>}, {pipeline_mode = #tpu.pipeline_mode<synchronous>, transform_indices = @transform_5, window_bounds = array<i64: 32, 128>}, {pipeline_mode = #tpu.pipeline_mode<synchronous>, transform_indices = @transform_6, window_bounds = array<i64: 1, 128>}, {transform_indices = @transform_7, window_bounds = array<i64: 8, 128>}]} {
    %c0 = arith.constant 0 : index
    %c0_0 = arith.constant 0 : index
    %0 = vector.load %arg1[%c0, %c0_0] : memref<8x32xf32, #tpu.memory_space<vmem>>, vector<8x32xf32>
    %c0_1 = arith.constant 0 : index
    %c0_2 = arith.constant 0 : index
    %1 = vector.load %arg2[%c0_1, %c0_2] : memref<32x64xf32, #tpu.memory_space<vmem>>, vector<32x64xf32>
    %cst = arith.constant dense<0.000000e+00> : vector<8x64xf32>
    %2 = tpu.matmul %0, %1, %cst {dimension_numbers = #tpu.dot_dimension_numbers<[1], [0], [0], [1], [0, 0, 1, 1], [], []>} : vector<8x32xf32>, vector<32x64xf32>, vector<8x64xf32> -> vector<8x64xf32>
    %c0_3 = arith.constant 0 : index
    %c0_4 = arith.constant 0 : index
    %3 = vector.load %arg3[%c0_3, %c0_4] : memref<1x64xf32, #tpu.memory_space<vmem>>, vector<1x64xf32>
    %4 = vector.broadcast %3 : vector<1x64xf32> to vector<8x64xf32>
    %5 = arith.addf %2, %4 : vector<8x64xf32>
    %6 = arith.negf %5 : vector<8x64xf32>
    %7 = math.exp %6 : vector<8x64xf32>
    %cst_5 = arith.constant 1.000000e+00 : f32
    %8 = vector.broadcast %cst_5 : f32 to vector<8x64xf32>
    %9 = arith.addf %8, %7 : vector<8x64xf32>
    %10 = arith.divf %8, %9 : vector<8x64xf32>
    %11 = arith.mulf %5, %10 : vector<8x64xf32>
    %c0_6 = arith.constant 0 : index
    %c0_7 = arith.constant 0 : index
    %12 = vector.load %arg4[%c0_6, %c0_7] : memref<64x32xf32, #tpu.memory_space<vmem>>, vector<64x32xf32>
    %cst_8 = arith.constant dense<0.000000e+00> : vector<8x32xf32>
    %13 = tpu.matmul %11, %12, %cst_8 {dimension_numbers = #tpu.dot_dimension_numbers<[1], [0], [0], [1], [0, 0, 1, 1], [], []>} : vector<8x64xf32>, vector<64x32xf32>, vector<8x32xf32> -> vector<8x32xf32>
    %c0_9 = arith.constant 0 : index
    %c0_10 = arith.constant 0 : index
    %14 = vector.load %arg5[%c0_9, %c0_10] : memref<1x32xf32, #tpu.memory_space<vmem>>, vector<1x32xf32>
    %15 = vector.broadcast %14 : vector<1x32xf32> to vector<8x32xf32>
    %16 = arith.addf %13, %15 : vector<8x32xf32>
    %17 = arith.negf %16 : vector<8x32xf32>
    %18 = math.exp %17 : vector<8x32xf32>
    %cst_11 = arith.constant 1.000000e+00 : f32
    %19 = vector.broadcast %cst_11 : f32 to vector<8x32xf32>
    %20 = arith.addf %19, %18 : vector<8x32xf32>
    %21 = arith.divf %19, %20 : vector<8x32xf32>
    %22 = arith.mulf %16, %21 : vector<8x32xf32>
    %c0_12 = arith.constant 0 : index
    %c0_13 = arith.constant 0 : index
    %23 = vector.load %arg6[%c0_12, %c0_13] : memref<32x128xf32, #tpu.memory_space<vmem>>, vector<32x128xf32>
    %cst_14 = arith.constant dense<0.000000e+00> : vector<8x128xf32>
    %24 = tpu.matmul %22, %23, %cst_14 {dimension_numbers = #tpu.dot_dimension_numbers<[1], [0], [0], [1], [0, 0, 1, 1], [], []>} : vector<8x32xf32>, vector<32x128xf32>, vector<8x128xf32> -> vector<8x128xf32>
    %c0_15 = arith.constant 0 : index
    %c0_16 = arith.constant 0 : index
    %25 = vector.load %arg7[%c0_15, %c0_16] : memref<1x128xf32, #tpu.memory_space<vmem>>, vector<1x128xf32>
    %26 = vector.broadcast %25 : vector<1x128xf32> to vector<8x128xf32>
    %27 = arith.addf %24, %26 : vector<8x128xf32>
    %28 = arith.negf %27 : vector<8x128xf32>
    %29 = math.exp %28 : vector<8x128xf32>
    %cst_17 = arith.constant 1.000000e+00 : f32
    %30 = vector.broadcast %cst_17 : f32 to vector<8x128xf32>
    %31 = arith.addf %30, %29 : vector<8x128xf32>
    %32 = arith.divf %30, %31 : vector<8x128xf32>
    %33 = arith.mulf %27, %32 : vector<8x128xf32>
    %34 = arith.truncf %33 : vector<8x128xf32> to vector<8x128xbf16>
    %c0_18 = arith.constant 0 : index
    %c0_19 = arith.constant 0 : index
    %35 = vector.load %arg8[%c0_18, %c0_19] : memref<8x128xbf16, #tpu.memory_space<vmem>>, vector<8x128xbf16>
    tpu.vector_store %arg8[%c0_18, %c0_19], %34 {strides = array<i32>} : memref<8x128xbf16, #tpu.memory_space<vmem>>, vector<8x128xbf16>,
    return
  }
  func.func @transform_0(%arg0: i32) -> (i32, i32) {
    %c0_i32 = arith.constant 0 : i32
    %c0_i32_0 = arith.constant 0 : i32
    return %arg0, %c0_i32 : i32, i32
  }
  func.func @transform_1(%arg0: i32) -> (i32, i32) {
    %c0_i32 = arith.constant 0 : i32
    %c0_i32_0 = arith.constant 0 : i32
    %c0_i32_1 = arith.constant 0 : i32
    return %c0_i32, %c0_i32_0 : i32, i32
  }
  func.func @transform_2(%arg0: i32) -> (i32, i32) {
    %c0_i32 = arith.constant 0 : i32
    %c0_i32_0 = arith.constant 0 : i32
    %c0_i32_1 = arith.constant 0 : i32
    return %c0_i32, %c0_i32_0 : i32, i32
  }
  func.func @transform_3(%arg0: i32) -> (i32, i32) {
    %c0_i32 = arith.constant 0 : i32
    %c0_i32_0 = arith.constant 0 : i32
    %c0_i32_1 = arith.constant 0 : i32
    return %c0_i32, %c0_i32_0 : i32, i32
  }
  func.func @transform_4(%arg0: i32) -> (i32, i32) {
    %c0_i32 = arith.constant 0 : i32
    %c0_i32_0 = arith.constant 0 : i32
    %c0_i32_1 = arith.constant 0 : i32
    return %c0_i32, %c0_i32_0 : i32, i32
  }
  func.func @transform_5(%arg0: i32) -> (i32, i32) {
    %c0_i32 = arith.constant 0 : i32
    %c0_i32_0 = arith.constant 0 : i32
    %c0_i32_1 = arith.constant 0 : i32
    return %c0_i32, %c0_i32_0 : i32, i32
  }
  func.func @transform_6(%arg0: i32) -> (i32, i32) {
    %c0_i32 = arith.constant 0 : i32
    %c0_i32_0 = arith.constant 0 : i32
    %c0_i32_1 = arith.constant 0 : i32
    return %c0_i32, %c0_i32_0 : i32, i32
  }
  func.func @transform_7(%arg0: i32) -> (i32, i32) {
    %c0_i32 = arith.constant 0 : i32
    %c0_i32_0 = arith.constant 0 : i32
    return %arg0, %c0_i32 : i32, i32
  }
}

</mosaic_0001>

<llo_original>
// kernel: tpu_custom_call.1
$region0: #{tpu_custom_call.1}
  #allocation0 [shape = 'u32[]', space=smem, size = 0x4, offset = 0x4, fixed_abs, tag = 'smem constant byte address 0x4 - core index']
  #allocation1 [shape = 'u32[72,128]{1,0:T(1,128)}', space=vmem, size = 0x9000, scoped, tag = 'internal scratch']
  %s0 = inlined_call_operand.vmem [shape: f32[8,32], index: 0, kind: input, shape index: {}]
  %s1 = inlined_call_operand.vmem [shape: f32[32,64], index: 1, kind: input, shape index: {}]
  %s2 = inlined_call_operand.vmem [shape: f32[1,64], index: 2, kind: input, shape index: {}]
  %s3 = inlined_call_operand.vmem [shape: f32[64,32], index: 3, kind: input, shape index: {}]
  %s4 = inlined_call_operand.vmem [shape: f32[1,32], index: 4, kind: input, shape index: {}]
  %s5 = inlined_call_operand.vmem [shape: f32[32,128], index: 5, kind: input, shape index: {}]
  %s6 = inlined_call_operand.vmem [shape: f32[1,128], index: 6, kind: input, shape index: {}]
  %s7 = inlined_call_operand.hbm [shape: bf16[8,128], index: 7, kind: output, shape index: {}]
  %s8 = sld [smem:[#allocation0]]
  $region38: #{tpu_custom_call.1} parent=0
    _
  %s10 = ssub.s32 1, %s8
  %s11 = scalar_select 0, %s10, %s8
  $region1: #{tpu_custom_call.1} parent=0
    #allocation2 [shape = 'u8[2048]{0}', space=vmem, size = 0x800, scoped, tag = 'output window, operand 0, single buffered']
    #allocation3 [shape = 's32[1]{0}', space=sflag, size = 0x4, scoped, tag = 'scoped memory for tpu_custom_call.1']
    %12 = vsyncpa [#allocation3], 0
    // Predicated region
    $region2: #{tpu_custom_call.1} parent=1 // pred_check
      _
    $region3: #{tpu_custom_call.1} parent=1 // pred_check_branch
      %14 = sbr.rel (0) target = $region5
    $region4: #{tpu_custom_call.1} parent=1 // pred_region
      _
    $region5: #{tpu_custom_call.1} parent=1 // pred_fallthru
      _
    // Predicated region
    $region6: #{tpu_custom_call.1} parent=1 // pred_check
      _
    $region7: #{tpu_custom_call.1} parent=1 // pred_check_branch
      %16 = sbr.rel (0) target = $region9
    $region8: #{tpu_custom_call.1} parent=1 // pred_region
      _
    $region9: #{tpu_custom_call.1} parent=1 // pred_fallthru
      _
    // Predicated region
    $region10: #{tpu_custom_call.1} parent=1 // pred_check
      _
    $region11: #{tpu_custom_call.1} parent=1 // pred_check_branch
      %18 = sbr.rel (0) target = $region13
    $region12: #{tpu_custom_call.1} parent=1 // pred_region
      _
    $region13: #{tpu_custom_call.1} parent=1 // pred_fallthru
      _
    // Predicated region
    $region14: #{tpu_custom_call.1} parent=1 // pred_check
      _
    $region15: #{tpu_custom_call.1} parent=1 // pred_check_branch
      %20 = sbr.rel (0) target = $region17
    $region16: #{tpu_custom_call.1} parent=1 // pred_region
      _
    $region17: #{tpu_custom_call.1} parent=1 // pred_fallthru
      _
    // Predicated region
    $region18: #{tpu_custom_call.1} parent=1 // pred_check
      _
    $region19: #{tpu_custom_call.1} parent=1 // pred_check_branch
      %22 = sbr.rel (0) target = $region21
    $region20: #{tpu_custom_call.1} parent=1 // pred_region
      _
    $region21: #{tpu_custom_call.1} parent=1 // pred_fallthru
      _
    // Predicated region
    $region22: #{tpu_custom_call.1} parent=1 // pred_check
      _
    $region23: #{tpu_custom_call.1} parent=1 // pred_check_branch
      %24 = sbr.rel (0) target = $region25
    $region24: #{tpu_custom_call.1} parent=1 // pred_region
      _
    $region25: #{tpu_custom_call.1} parent=1 // pred_fallthru
      _
    // Predicated region
    $region26: #{tpu_custom_call.1} parent=1 // pred_check
      _
    $region27: #{tpu_custom_call.1} parent=1 // pred_check_branch
      %26 = sbr.rel (0) target = $region29
    $region28: #{tpu_custom_call.1} parent=1 // pred_region
      _
    $region29: #{tpu_custom_call.1} parent=1 // pred_fallthru
      _
    %v27 = vld [vmem:[%s0] sm:$0xff]
    %v28 = vld [vmem:[%s1] sm:$0xff]
    %v29 = vld [vmem:[%s1 + $0x8] sm:$0xff]
    %v30 = vld [vmem:[%s1 + $0x10] sm:$0xff]
    %v31 = vld [vmem:[%s1 + $0x18] sm:$0xff]
    %v32 = vld [vmem:[%s2] sm:$0x1]
    %v34 = vperm.slane %v32, 0
    %vm36 = vcmask 261120
    %v38 = vsel %vm36, %v27, 0
    %40 = vmatpush.msra.mxu0 0.0
    %41 = vmatpush.msra.mxu0 0.0
    %42 = vmatpush.msra.mxu0 0.0
    %43 = vmatpush.msra.mxu0 0.0
    %44 = vmatpush.msra.mxu0 0.0
    %45 = vmatpush.msra.mxu0 0.0
    %46 = vmatpush.msra.mxu0 0.0
    %47 = vmatpush.msra.mxu0 0.0
    %48 = vmatpush.msra.mxu0 0.0
    %49 = vmatpush.msra.mxu0 0.0
    %50 = vmatpush.msra.mxu0 0.0
    %51 = vmatpush.msra.mxu0 0.0
    %52 = vmatpush.msra.mxu0 %v31
    %53 = vmatpush.msra.mxu0 %v30
    %54 = vmatpush.msra.mxu0 %v29
    %55 = vmatpush.msra.mxu0 %v28
    %56 = vmatmul.f32.gmra.mxu0 %v38
    %v57 = vpop.f32.mrf.mxu0
    %v58 = vadd.f32 %v34, %v57
    %59 = vdwg.mxu0
    %v60 = vxor.u32 %v58, 2147483648
    %v61 = vmul.f32 %v60, 1.442695
    %v62 = vpow.pop %v61
    %v63 = vadd.f32 %v62, 1.0
    %v64 = vrcp.pop %v63
    %v65 = vmul.f32 %v63, %v64
    %v66 = vsub.f32 1.0, %v65
    %v67 = vmul.f32 %v64, %v66
    %v68 = vadd.f32 %v64, %v67
    %vm69 = vweird.f32 %v63
    %vm70 = vweird.f32 %v64
    %vm71 = vmor %vm69, %vm70
    %v72 = vsel %vm71, %v64, %v68
    %v73 = vand.u32 2147483647, %v63
    %vm74 = vcmp.eq.f32.partialorder %v73, 8.507059e+37
    %v75 = vand.u32 %v63, 2147483648
    %v76 = vor.u32 1.1754944e-38, %v75
    %v77 = vsel %vm74, %v76, %v72
    %v78 = vmul.f32 1.0, %v77
    %v79 = vmul.f32 %v58, %v78
    %v80 = vld [vmem:[%s3] sm:$0xff]
    %v81 = vld [vmem:[%s3 + $0x8] sm:$0xff]
    %v82 = vld [vmem:[%s3 + $0x10] sm:$0xff]
    %v83 = vld [vmem:[%s3 + $0x18] sm:$0xff]
    %v84 = vld [vmem:[%s3 + $0x20] sm:$0xff]
    %v85 = vld [vmem:[%s3 + $0x28] sm:$0xff]
    %v86 = vld [vmem:[%s3 + $0x30] sm:$0xff]
    %v87 = vld [vmem:[%s3 + $0x38] sm:$0xff]
    %v88 = vld [vmem:[%s4] sm:$0x1]
    %v90 = vperm.slane %v88, 0
    %vm92 = vcmask 523264
    %v94 = vsel %vm92, %v79, 0
    %96 = vmatpush.msra.mxu0 0.0
    %97 = vmatpush.msra.mxu0 0.0
    %98 = vmatpush.msra.mxu0 0.0
    %99 = vmatpush.msra.mxu0 0.0
    %100 = vmatpush.msra.mxu0 0.0
    %101 = vmatpush.msra.mxu0 0.0
    %102 = vmatpush.msra.mxu0 0.0
    %103 = vmatpush.msra.mxu0 0.0
    %104 = vmatpush.msra.mxu0 %v87
    %105 = vmatpush.msra.mxu0 %v86
    %106 = vmatpush.msra.mxu0 %v85
    %107 = vmatpush.msra.mxu0 %v84
    %108 = vmatpush.msra.mxu0 %v83
    %109 = vmatpush.msra.mxu0 %v82
    %110 = vmatpush.msra.mxu0 %v81
    %111 = vmatpush.msra.mxu0 %v80
    %112 = vmatmul.f32.gmra.mxu0 %v94
    %v113 = vpop.f32.mrf.mxu0
    %v114 = vadd.f32 %v90, %v113
    %115 = vdwg.mxu0
    %v116 = vxor.u32 %v114, 2147483648
    %v117 = vmul.f32 %v116, 1.442695
    %v118 = vpow.pop %v117
    %v119 = vadd.f32 %v118, 1.0
    %v120 = vrcp.pop %v119
    %v121 = vmul.f32 %v119, %v120
    %v122 = vsub.f32 1.0, %v121
    %v123 = vmul.f32 %v120, %v122
    %v124 = vadd.f32 %v120, %v123
    %vm125 = vweird.f32 %v119
    %vm126 = vweird.f32 %v120
    %vm127 = vmor %vm125, %vm126
    %v128 = vsel %vm127, %v120, %v124
    %v129 = vand.u32 2147483647, %v119
    %vm130 = vcmp.eq.f32.partialorder %v129, 8.507059e+37
    %v131 = vand.u32 %v119, 2147483648
    %v132 = vor.u32 1.1754944e-38, %v131
    %v133 = vsel %vm130, %v132, %v128
    %v134 = vmul.f32 1.0, %v133
    %v135 = vmul.f32 %v114, %v134
    %v136 = vld [vmem:[%s5] sm:$0xff]
    %v137 = vld [vmem:[%s5 + $0x8] sm:$0xff]
    %v138 = vld [vmem:[%s5 + $0x10] sm:$0xff]
    %v139 = vld [vmem:[%s5 + $0x18] sm:$0xff]
    %v140 = vld [vmem:[%s6] sm:$0x1]
    %v142 = vperm.slane %v140, 0
    %v145 = vsel %vm36, %v135, 0
    %147 = vmatpush.msra.mxu0 0.0
    %148 = vmatpush.msra.mxu0 0.0
    %149 = vmatpush.msra.mxu0 0.0
    %150 = vmatpush.msra.mxu0 0.0
    %151 = vmatpush.msra.mxu0 0.0
    %152 = vmatpush.msra.mxu0 0.0
    %153 = vmatpush.msra.mxu0 0.0
    %154 = vmatpush.msra.mxu0 0.0
    %155 = vmatpush.msra.mxu0 0.0
    %156 = vmatpush.msra.mxu0 0.0
    %157 = vmatpush.msra.mxu0 0.0
    %158 = vmatpush.msra.mxu0 0.0
    %159 = vmatpush.msra.mxu0 %v139
    %160 = vmatpush.msra.mxu0 %v138
    %161 = vmatpush.msra.mxu0 %v137
    %162 = vmatpush.msra.mxu0 %v136
    %163 = vmatmul.f32.gmra.mxu0 %v145
    %v164 = vpop.f32.mrf.mxu0
    %v165 = vadd.f32 %v142, %v164
    %166 = vdwg.mxu0
    %v167 = vxor.u32 %v165, 2147483648
    %v168 = vmul.f32 %v167, 1.442695
    %v169 = vpow.pop %v168
    %v170 = vadd.f32 %v169, 1.0
    %v171 = vrcp.pop %v170
    %v172 = vmul.f32 %v170, %v171
    %v173 = vsub.f32 1.0, %v172
    %v174 = vmul.f32 %v171, %v173
    %v175 = vadd.f32 %v171, %v174
    %vm176 = vweird.f32 %v170
    %vm177 = vweird.f32 %v171
    %vm178 = vmor %vm176, %vm177
    %v179 = vsel %vm178, %v171, %v175
    %v180 = vand.u32 2147483647, %v170
    %vm181 = vcmp.eq.f32.partialorder %v180, 8.507059e+37
    %v182 = vand.u32 %v170, 2147483648
    %v183 = vor.u32 1.1754944e-38, %v182
    %v184 = vsel %vm181, %v183, %v179
    %v185 = vmul.f32 1.0, %v184
    %v186 = vmul.f32 %v165, %v185
    %v187 = vpack.c.bf16 %v186, %v186
    %188 = vst [vmem:[#allocation2] sm:$0xf] %v187
    // Predicated region
    $region30: #{tpu_custom_call.1} parent=1 // pred_check
      _
    $region31: #{tpu_custom_call.1} parent=1 // pred_check_branch
      %190 = sbr.rel (0) target = $region33
    $region32: #{tpu_custom_call.1} parent=1 // pred_region
      %192 = vsyncadd [#allocation3], 0
      %s194 = sshll.u32 [#allocation2], 4
      %s195 = int_to_ptr.vmem [resolvable:$true] %s194
      %s196 = sshll.u32 %s7, 4
      %s197 = int_to_ptr.hbm [resolvable:$true] %s196
      %199 = dma.vmem_to_hbm [thread:$0]  %s195, 64, %s197, [#allocation3]
    $region33: #{tpu_custom_call.1} parent=1 // pred_fallthru
      _
    // Predicated region
    $region34: #{tpu_custom_call.1} parent=1 // pred_check
      _
    $region35: #{tpu_custom_call.1} parent=1 // pred_check_branch
      %201 = sbr.rel (0) target = $region37
    $region36: #{tpu_custom_call.1} parent=1 // pred_region
      %203 = dma.done [#allocation3], 64
    $region37: #{tpu_custom_call.1} parent=1 // pred_fallthru
      _
    %204 = vsyncpa [#allocation3], 1

</llo_original>
